<compile_context>
chip_gen: v7x
topology: tpu7x:2x2x1
jax: 0.10.0
libtpu: 0.0.40
codegen_flags: <defaults>
</compile_context>

<pallas_src>
import functools

import jax
import jax.numpy as jnp
from jax.experimental import pallas as pl
from jax.experimental.pallas import tpu as pltpu


def _embeddings_kernel(tok_ref, emb_hbm, pos_ref, out_ref, row_buf, sems, *,
                       dropout_p, training, seed, tS):
    b = pl.program_id(0)
    s = pl.program_id(1)
    V = emb_hbm.shape[0]

    # --- Row gather: DMA the tS needed embedding rows from HBM into VMEM scratch. ---
    # All tS row DMAs are issued back-to-back (all in flight concurrently), then waited on.
    for i in range(tS):
        tok = tok_ref[b, s * tS + i]
        # Clamp to the valid range so a bad token id cannot trigger an OOB HBM DMA.
        tok = jnp.minimum(jnp.maximum(tok, 0), V - 1)
        pltpu.make_async_copy(
            emb_hbm.at[pl.ds(tok, 1), :], row_buf.at[pl.ds(i, 1), :], sems.at[i]
        ).start()
    for i in range(tS):
        pltpu.make_async_copy(
            emb_hbm.at[pl.ds(0, 1), :], row_buf.at[pl.ds(i, 1), :], sems.at[i]
        ).wait()

    # --- Add (absolute) positional encoding. ---
    y = row_buf[...] + pos_ref[...]                                  # (tS, D) f32

    # --- Dropout (inverted). Identity when training=False (eval mode). ---
    if training and dropout_p > 0.0:
        # Seed mixes batch-tile and seq-tile indices -> independent masks per grid step.
        pltpu.prng_seed(seed + b * pl.num_programs(1) + s)
        bits = pltpu.bitcast(pltpu.prng_random_bits(y.shape), jnp.uint32)
        thresh = jnp.uint32(min(int(round(dropout_p * (1 << 32))), (1 << 32) - 1))
        keep = bits >= thresh                                        # P(keep) = 1 - p
        y = jnp.where(keep, y * (1.0 / (1.0 - dropout_p)), 0.0)

    out_ref[0] = y.astype(out_ref.dtype)


def embeddings_forward(tokens, emb_table, pos_table, *,
                       dropout_p=0.1, training=False, seed=0, tS=8):
    """tokens: (B, S) int, emb_table: (V, D) f32, pos_table: (S, D) f32 -> (B, S, D) f32."""
    B, S = tokens.shape
    V, D = emb_table.shape
    assert pos_table.shape == (S, D)
    assert S % tS == 0 and tS % 8 == 0, "seq tile must divide S and be a multiple of 8"
    # TODO(synk): for configs where D is not a multiple of 128, pad D (lane-dense stores);
    # the demo uses D=128 so stores are unmasked.

    kernel = functools.partial(_embeddings_kernel, dropout_p=float(dropout_p),
                               training=bool(training), seed=int(seed), tS=int(tS))

    return pl.pallas_call(
        kernel,
        out_shape=jax.ShapeDtypeStruct((B, S, D), jnp.float32),
        grid_spec=pltpu.PrefetchScalarGridSpec(
            num_scalar_prefetch=1,                               # token ids -> SMEM
            grid=(B, S // tS),
            in_specs=[
                pl.BlockSpec(memory_space=pl.ANY),               # embedding table in HBM
                pl.BlockSpec((tS, D), lambda b, s, tok: (s, 0)), # APE tile
            ],
            out_specs=pl.BlockSpec((1, tS, D), lambda b, s, tok: (b, s, 0)),
            scratch_shapes=[
                pltpu.VMEM((tS, D), jnp.float32),                # gathered embedding rows
                pltpu.SemaphoreType.DMA((tS,)),                  # one sem per row DMA
            ],
        ),
        compiler_params=pltpu.CompilerParams(
            dimension_semantics=("parallel", "parallel")),
    )(tokens.astype(jnp.int32), emb_table, pos_table)


def sinusoidal_pe(max_len, d_model):
    """Standard sinusoidal absolute positional encoding (classic Transformer APE)."""
    pos = jnp.arange(max_len, dtype=jnp.float32)[:, None]
    div = jnp.exp(jnp.arange(0, d_model, 2, dtype=jnp.float32)
                  * (-jnp.log(10000.0) / d_model))
    pe = jnp.zeros((max_len, d_model), jnp.float32)
    pe = pe.at[:, 0::2].set(jnp.sin(pos * div))
    pe = pe.at[:, 1::2].set(jnp.cos(pos * div))
    return pe


if __name__ == "__main__":
    # Config mirroring Embeddings.__init__: vocab_size, embed_dim, max_len, dropout, ape_class.
    # embed_dim=128 keeps the output lane-dense (multiple of 128).
    cfg = dict(vocab_size=64, embed_dim=128, max_len=16, dropout=0.1)
    B, S = 2, 16

    key = jax.random.PRNGKey(0)
    k_emb, k_tok, k_ts = jax.random.split(key, 3)

    emb_table = jax.random.normal(
        k_emb, (cfg["vocab_size"], cfg["embed_dim"]), jnp.float32)        # nn.Embedding.weight
    tokens = jax.random.randint(k_tok, (B, S), 0, cfg["vocab_size"], jnp.int32)
    timestamps = jnp.cumsum(
        jax.random.randint(k_ts, (B, S), 1, 100, jnp.int32), axis=-1)
    # TODO(synk): 'UnixTimeDeltaPosition' (timestamp-driven APE from models.position) is not
    # available; using the standard sinusoidal APE branch, so `timestamps` is unused.

    pe = sinusoidal_pe(cfg["max_len"], cfg["embed_dim"])[:S]

    out = embeddings_forward(tokens, emb_table, pe,
                             dropout_p=cfg["dropout"], training=False)    # eval-mode dropout
    out = jax.block_until_ready(out)

    # Pure-JAX reference: embedding gather + positional add + float cast (dropout = identity in eval).
    ref = (emb_table[tokens] + pe[None, :, :]).astype(jnp.float32)
    assert out.shape == (B, S, cfg["embed_dim"]), out.shape
    assert out.dtype == jnp.float32
    assert jnp.allclose(out, ref, atol=1e-5, rtol=1e-5), float(jnp.max(jnp.abs(out - ref)))

    print("KERNEL_OK")
</pallas_src>

<mosaic_0001>
module attributes {stable_mosaic.version = 11 : i64} {
  func.func @_embeddings_kernel(%arg0: i32, %arg1: i32, %arg2: memref<2x16xi32, #tpu.memory_space<smem>>, %arg3: memref<64x128xf32, #tpu.memory_space<any>>, %arg4: memref<8x128xf32, #tpu.memory_space<vmem>>, %arg5: memref<1x8x128xf32, #tpu.memory_space<vmem>>, %arg6: memref<8x128xf32, #tpu.memory_space<vmem>>, %arg7: memref<8x!tpu.dma_semaphore, #tpu.memory_space<semaphore_mem>>) attributes {dimension_semantics = [#tpu.dimension_semantics<parallel>, #tpu.dimension_semantics<parallel>], iteration_bounds = array<i64: 2, 2>, scalar_prefetch = 1 : i64, scratch_operands = 2 : i64, tpu.core_type = #tpu.core_type<tc>, window_params = [{}, {transform_indices = @transform_1, window_bounds = array<i64: 8, 128>}, {transform_indices = @transform_2, window_bounds = array<i64: 1, 8, 128>}]} {
    %c8_i32 = arith.constant 8 : i32
    %0 = arith.muli %arg1, %c8_i32 : i32
    %c0_i32 = arith.constant 0 : i32
    %1 = arith.addi %0, %c0_i32 : i32
    %2 = arith.index_cast %arg0 : i32 to index
    %3 = arith.index_cast %1 : i32 to index
    %4 = memref.load %arg2[%2, %3] : memref<2x16xi32, #tpu.memory_space<smem>>
    %c0_i32_0 = arith.constant 0 : i32
    %5 = arith.maxsi %4, %c0_i32_0 : i32
    %c63_i32 = arith.constant 63 : i32
    %6 = arith.minsi %5, %c63_i32 : i32
    %c0_i32_1 = arith.constant 0 : i32
    %c0_i32_2 = arith.constant 0 : i32
    %7 = tpu.memref_slice %arg3[%6, %c0_i32_2] : memref<64x128xf32, #tpu.memory_space<any>> -> memref<1x128xf32, #tpu.memory_space<any>>
    %c0_i32_3 = arith.constant 0 : i32
    %c0_i32_4 = arith.constant 0 : i32
    %8 = tpu.memref_slice %arg6[%c0_i32_3, %c0_i32_4] : memref<8x128xf32, #tpu.memory_space<vmem>> -> memref<1x128xf32, #tpu.memory_space<vmem>>
    %9 = tpu.memref_slice %arg7[%c0_i32_1] : memref<8x!tpu.dma_semaphore, #tpu.memory_space<semaphore_mem>> -> memref<1x!tpu.dma_semaphore, #tpu.memory_space<semaphore_mem>>
    %10 = tpu.memref_squeeze %9 : memref<1x!tpu.dma_semaphore, #tpu.memory_space<semaphore_mem>> -> memref<!tpu.dma_semaphore, #tpu.memory_space<semaphore_mem>>
    tpu.enqueue_dma source(%7 : memref<1x128xf32, #tpu.memory_space<any>>) target(%8 : memref<1x128xf32, #tpu.memory_space<vmem>>) target_semaphore(%10 : memref<!tpu.dma_semaphore, #tpu.memory_space<semaphore_mem>>)
    %c8_i32_5 = arith.constant 8 : i32
    %11 = arith.muli %arg1, %c8_i32_5 : i32
    %c1_i32 = arith.constant 1 : i32
    %12 = arith.addi %11, %c1_i32 : i32
    %13 = arith.index_cast %arg0 : i32 to index
    %14 = arith.index_cast %12 : i32 to index
    %15 = memref.load %arg2[%13, %14] : memref<2x16xi32, #tpu.memory_space<smem>>
    %c0_i32_6 = arith.constant 0 : i32
    %16 = arith.maxsi %15, %c0_i32_6 : i32
    %c63_i32_7 = arith.constant 63 : i32
    %17 = arith.minsi %16, %c63_i32_7 : i32
    %c1_i32_8 = arith.constant 1 : i32
    %c0_i32_9 = arith.constant 0 : i32
    %18 = tpu.memref_slice %arg3[%17, %c0_i32_9] : memref<64x128xf32, #tpu.memory_space<any>> -> memref<1x128xf32, #tpu.memory_space<any>>
    %c1_i32_10 = arith.constant 1 : i32
    %c0_i32_11 = arith.constant 0 : i32
    %19 = tpu.memref_slice %arg6[%c1_i32_10, %c0_i32_11] : memref<8x128xf32, #tpu.memory_space<vmem>> -> memref<1x128xf32, #tpu.memory_space<vmem>>
    %20 = tpu.memref_slice %arg7[%c1_i32_8] : memref<8x!tpu.dma_semaphore, #tpu.memory_space<semaphore_mem>> -> memref<1x!tpu.dma_semaphore, #tpu.memory_space<semaphore_mem>>
    %21 = tpu.memref_squeeze %20 : memref<1x!tpu.dma_semaphore, #tpu.memory_space<semaphore_mem>> -> memref<!tpu.dma_semaphore, #tpu.memory_space<semaphore_mem>>
    tpu.enqueue_dma source(%18 : memref<1x128xf32, #tpu.memory_space<any>>) target(%19 : memref<1x128xf32, #tpu.memory_space<vmem>>) target_semaphore(%21 : memref<!tpu.dma_semaphore, #tpu.memory_space<semaphore_mem>>)
    %c8_i32_12 = arith.constant 8 : i32
    %22 = arith.muli %arg1, %c8_i32_12 : i32
    %c2_i32 = arith.constant 2 : i32
    %23 = arith.addi %22, %c2_i32 : i32
    %24 = arith.index_cast %arg0 : i32 to index
    %25 = arith.index_cast %23 : i32 to index
    %26 = memref.load %arg2[%24, %25] : memref<2x16xi32, #tpu.memory_space<smem>>
    %c0_i32_13 = arith.constant 0 : i32
    %27 = arith.maxsi %26, %c0_i32_13 : i32
    %c63_i32_14 = arith.constant 63 : i32
    %28 = arith.minsi %27, %c63_i32_14 : i32
    %c2_i32_15 = arith.constant 2 : i32
    %c0_i32_16 = arith.constant 0 : i32
    %29 = tpu.memref_slice %arg3[%28, %c0_i32_16] : memref<64x128xf32, #tpu.memory_space<any>> -> memref<1x128xf32, #tpu.memory_space<any>>
    %c2_i32_17 = arith.constant 2 : i32
    %c0_i32_18 = arith.constant 0 : i32
    %30 = tpu.memref_slice %arg6[%c2_i32_17, %c0_i32_18] : memref<8x128xf32, #tpu.memory_space<vmem>> -> memref<1x128xf32, #tpu.memory_space<vmem>>
    %31 = tpu.memref_slice %arg7[%c2_i32_15] : memref<8x!tpu.dma_semaphore, #tpu.memory_space<semaphore_mem>> -> memref<1x!tpu.dma_semaphore, #tpu.memory_space<semaphore_mem>>
    %32 = tpu.memref_squeeze %31 : memref<1x!tpu.dma_semaphore, #tpu.memory_space<semaphore_mem>> -> memref<!tpu.dma_semaphore, #tpu.memory_space<semaphore_mem>>
    tpu.enqueue_dma source(%29 : memref<1x128xf32, #tpu.memory_space<any>>) target(%30 : memref<1x128xf32, #tpu.memory_space<vmem>>) target_semaphore(%32 : memref<!tpu.dma_semaphore, #tpu.memory_space<semaphore_mem>>)
    %c8_i32_19 = arith.constant 8 : i32
    %33 = arith.muli %arg1, %c8_i32_19 : i32
    %c3_i32 = arith.constant 3 : i32
    %34 = arith.addi %33, %c3_i32 : i32
    %35 = arith.index_cast %arg0 : i32 to index
    %36 = arith.index_cast %34 : i32 to index
    %37 = memref.load %arg2[%35, %36] : memref<2x16xi32, #tpu.memory_space<smem>>
    %c0_i32_20 = arith.constant 0 : i32
    %38 = arith.maxsi %37, %c0_i32_20 : i32
    %c63_i32_21 = arith.constant 63 : i32
    %39 = arith.minsi %38, %c63_i32_21 : i32
    %c3_i32_22 = arith.constant 3 : i32
    %c0_i32_23 = arith.constant 0 : i32
    %40 = tpu.memref_slice %arg3[%39, %c0_i32_23] : memref<64x128xf32, #tpu.memory_space<any>> -> memref<1x128xf32, #tpu.memory_space<any>>
    %c3_i32_24 = arith.constant 3 : i32
    %c0_i32_25 = arith.constant 0 : i32
    %41 = tpu.memref_slice %arg6[%c3_i32_24, %c0_i32_25] : memref<8x128xf32, #tpu.memory_space<vmem>> -> memref<1x128xf32, #tpu.memory_space<vmem>>
    %42 = tpu.memref_slice %arg7[%c3_i32_22] : memref<8x!tpu.dma_semaphore, #tpu.memory_space<semaphore_mem>> -> memref<1x!tpu.dma_semaphore, #tpu.memory_space<semaphore_mem>>
    %43 = tpu.memref_squeeze %42 : memref<1x!tpu.dma_semaphore, #tpu.memory_space<semaphore_mem>> -> memref<!tpu.dma_semaphore, #tpu.memory_space<semaphore_mem>>
    tpu.enqueue_dma source(%40 : memref<1x128xf32, #tpu.memory_space<any>>) target(%41 : memref<1x128xf32, #tpu.memory_space<vmem>>) target_semaphore(%43 : memref<!tpu.dma_semaphore, #tpu.memory_space<semaphore_mem>>)
    %c8_i32_26 = arith.constant 8 : i32
    %44 = arith.muli %arg1, %c8_i32_26 : i32
    %c4_i32 = arith.constant 4 : i32
    %45 = arith.addi %44, %c4_i32 : i32
    %46 = arith.index_cast %arg0 : i32 to index
    %47 = arith.index_cast %45 : i32 to index
    %48 = memref.load %arg2[%46, %47] : memref<2x16xi32, #tpu.memory_space<smem>>
    %c0_i32_27 = arith.constant 0 : i32
    %49 = arith.maxsi %48, %c0_i32_27 : i32
    %c63_i32_28 = arith.constant 63 : i32
    %50 = arith.minsi %49, %c63_i32_28 : i32
    %c4_i32_29 = arith.constant 4 : i32
    %c0_i32_30 = arith.constant 0 : i32
    %51 = tpu.memref_slice %arg3[%50, %c0_i32_30] : memref<64x128xf32, #tpu.memory_space<any>> -> memref<1x128xf32, #tpu.memory_space<any>>
    %c4_i32_31 = arith.constant 4 : i32
    %c0_i32_32 = arith.constant 0 : i32
    %52 = tpu.memref_slice %arg6[%c4_i32_31, %c0_i32_32] : memref<8x128xf32, #tpu.memory_space<vmem>> -> memref<1x128xf32, #tpu.memory_space<vmem>>
    %53 = tpu.memref_slice %arg7[%c4_i32_29] : memref<8x!tpu.dma_semaphore, #tpu.memory_space<semaphore_mem>> -> memref<1x!tpu.dma_semaphore, #tpu.memory_space<semaphore_mem>>
    %54 = tpu.memref_squeeze %53 : memref<1x!tpu.dma_semaphore, #tpu.memory_space<semaphore_mem>> -> memref<!tpu.dma_semaphore, #tpu.memory_space<semaphore_mem>>
    tpu.enqueue_dma source(%51 : memref<1x128xf32, #tpu.memory_space<any>>) target(%52 : memref<1x128xf32, #tpu.memory_space<vmem>>) target_semaphore(%54 : memref<!tpu.dma_semaphore, #tpu.memory_space<semaphore_mem>>)
    %c8_i32_33 = arith.constant 8 : i32
    %55 = arith.muli %arg1, %c8_i32_33 : i32
    %c5_i32 = arith.constant 5 : i32
    %56 = arith.addi %55, %c5_i32 : i32
    %57 = arith.index_cast %arg0 : i32 to index
    %58 = arith.index_cast %56 : i32 to index
    %59 = memref.load %arg2[%57, %58] : memref<2x16xi32, #tpu.memory_space<smem>>
    %c0_i32_34 = arith.constant 0 : i32
    %60 = arith.maxsi %59, %c0_i32_34 : i32
    %c63_i32_35 = arith.constant 63 : i32
    %61 = arith.minsi %60, %c63_i32_35 : i32
    %c5_i32_36 = arith.constant 5 : i32
    %c0_i32_37 = arith.constant 0 : i32
    %62 = tpu.memref_slice %arg3[%61, %c0_i32_37] : memref<64x128xf32, #tpu.memory_space<any>> -> memref<1x128xf32, #tpu.memory_space<any>>
    %c5_i32_38 = arith.constant 5 : i32
    %c0_i32_39 = arith.constant 0 : i32
    %63 = tpu.memref_slice %arg6[%c5_i32_38, %c0_i32_39] : memref<8x128xf32, #tpu.memory_space<vmem>> -> memref<1x128xf32, #tpu.memory_space<vmem>>
    %64 = tpu.memref_slice %arg7[%c5_i32_36] : memref<8x!tpu.dma_semaphore, #tpu.memory_space<semaphore_mem>> -> memref<1x!tpu.dma_semaphore, #tpu.memory_space<semaphore_mem>>
    %65 = tpu.memref_squeeze %64 : memref<1x!tpu.dma_semaphore, #tpu.memory_space<semaphore_mem>> -> memref<!tpu.dma_semaphore, #tpu.memory_space<semaphore_mem>>
    tpu.enqueue_dma source(%62 : memref<1x128xf32, #tpu.memory_space<any>>) target(%63 : memref<1x128xf32, #tpu.memory_space<vmem>>) target_semaphore(%65 : memref<!tpu.dma_semaphore, #tpu.memory_space<semaphore_mem>>)
    %c8_i32_40 = arith.constant 8 : i32
    %66 = arith.muli %arg1, %c8_i32_40 : i32
    %c6_i32 = arith.constant 6 : i32
    %67 = arith.addi %66, %c6_i32 : i32
    %68 = arith.index_cast %arg0 : i32 to index
    %69 = arith.index_cast %67 : i32 to index
    %70 = memref.load %arg2[%68, %69] : memref<2x16xi32, #tpu.memory_space<smem>>
    %c0_i32_41 = arith.constant 0 : i32
    %71 = arith.maxsi %70, %c0_i32_41 : i32
    %c63_i32_42 = arith.constant 63 : i32
    %72 = arith.minsi %71, %c63_i32_42 : i32
    %c6_i32_43 = arith.constant 6 : i32
    %c0_i32_44 = arith.constant 0 : i32
    %73 = tpu.memref_slice %arg3[%72, %c0_i32_44] : memref<64x128xf32, #tpu.memory_space<any>> -> memref<1x128xf32, #tpu.memory_space<any>>
    %c6_i32_45 = arith.constant 6 : i32
    %c0_i32_46 = arith.constant 0 : i32
    %74 = tpu.memref_slice %arg6[%c6_i32_45, %c0_i32_46] : memref<8x128xf32, #tpu.memory_space<vmem>> -> memref<1x128xf32, #tpu.memory_space<vmem>>
    %75 = tpu.memref_slice %arg7[%c6_i32_43] : memref<8x!tpu.dma_semaphore, #tpu.memory_space<semaphore_mem>> -> memref<1x!tpu.dma_semaphore, #tpu.memory_space<semaphore_mem>>
    %76 = tpu.memref_squeeze %75 : memref<1x!tpu.dma_semaphore, #tpu.memory_space<semaphore_mem>> -> memref<!tpu.dma_semaphore, #tpu.memory_space<semaphore_mem>>
    tpu.enqueue_dma source(%73 : memref<1x128xf32, #tpu.memory_space<any>>) target(%74 : memref<1x128xf32, #tpu.memory_space<vmem>>) target_semaphore(%76 : memref<!tpu.dma_semaphore, #tpu.memory_space<semaphore_mem>>)
    %c8_i32_47 = arith.constant 8 : i32
    %77 = arith.muli %arg1, %c8_i32_47 : i32
    %c7_i32 = arith.constant 7 : i32
    %78 = arith.addi %77, %c7_i32 : i32
    %79 = arith.index_cast %arg0 : i32 to index
    %80 = arith.index_cast %78 : i32 to index
    %81 = memref.load %arg2[%79, %80] : memref<2x16xi32, #tpu.memory_space<smem>>
    %c0_i32_48 = arith.constant 0 : i32
    %82 = arith.maxsi %81, %c0_i32_48 : i32
    %c63_i32_49 = arith.constant 63 : i32
    %83 = arith.minsi %82, %c63_i32_49 : i32
    %c7_i32_50 = arith.constant 7 : i32
    %c0_i32_51 = arith.constant 0 : i32
    %84 = tpu.memref_slice %arg3[%83, %c0_i32_51] : memref<64x128xf32, #tpu.memory_space<any>> -> memref<1x128xf32, #tpu.memory_space<any>>
    %c7_i32_52 = arith.constant 7 : i32
    %c0_i32_53 = arith.constant 0 : i32
    %85 = tpu.memref_slice %arg6[%c7_i32_52, %c0_i32_53] : memref<8x128xf32, #tpu.memory_space<vmem>> -> memref<1x128xf32, #tpu.memory_space<vmem>>
    %86 = tpu.memref_slice %arg7[%c7_i32_50] : memref<8x!tpu.dma_semaphore, #tpu.memory_space<semaphore_mem>> -> memref<1x!tpu.dma_semaphore, #tpu.memory_space<semaphore_mem>>
    %87 = tpu.memref_squeeze %86 : memref<1x!tpu.dma_semaphore, #tpu.memory_space<semaphore_mem>> -> memref<!tpu.dma_semaphore, #tpu.memory_space<semaphore_mem>>
    tpu.enqueue_dma source(%84 : memref<1x128xf32, #tpu.memory_space<any>>) target(%85 : memref<1x128xf32, #tpu.memory_space<vmem>>) target_semaphore(%87 : memref<!tpu.dma_semaphore, #tpu.memory_space<semaphore_mem>>)
    %c0_i32_54 = arith.constant 0 : i32
    %c0_i32_55 = arith.constant 0 : i32
    %c0_i32_56 = arith.constant 0 : i32
    %88 = tpu.memref_slice %arg3[%c0_i32_55, %c0_i32_56] : memref<64x128xf32, #tpu.memory_space<any>> -> memref<1x128xf32, #tpu.memory_space<any>>
    %c0_i32_57 = arith.constant 0 : i32
    %c0_i32_58 = arith.constant 0 : i32
    %89 = tpu.memref_slice %arg6[%c0_i32_57, %c0_i32_58] : memref<8x128xf32, #tpu.memory_space<vmem>> -> memref<1x128xf32, #tpu.memory_space<vmem>>
    %90 = tpu.memref_slice %arg7[%c0_i32_54] : memref<8x!tpu.dma_semaphore, #tpu.memory_space<semaphore_mem>> -> memref<1x!tpu.dma_semaphore, #tpu.memory_space<semaphore_mem>>
    %91 = tpu.memref_squeeze %90 : memref<1x!tpu.dma_semaphore, #tpu.memory_space<semaphore_mem>> -> memref<!tpu.dma_semaphore, #tpu.memory_space<semaphore_mem>>
    tpu.wait_dma2 semaphore(%91 : memref<!tpu.dma_semaphore, #tpu.memory_space<semaphore_mem>>) src(%88 : memref<1x128xf32, #tpu.memory_space<any>>) dst(%89 : memref<1x128xf32, #tpu.memory_space<vmem>>)
    %c1_i32_59 = arith.constant 1 : i32
    %c0_i32_60 = arith.constant 0 : i32
    %c0_i32_61 = arith.constant 0 : i32
    %92 = tpu.memref_slice %arg3[%c0_i32_60, %c0_i32_61] : memref<64x128xf32, #tpu.memory_space<any>> -> memref<1x128xf32, #tpu.memory_space<any>>
    %c1_i32_62 = arith.constant 1 : i32
    %c0_i32_63 = arith.constant 0 : i32
    %93 = tpu.memref_slice %arg6[%c1_i32_62, %c0_i32_63] : memref<8x128xf32, #tpu.memory_space<vmem>> -> memref<1x128xf32, #tpu.memory_space<vmem>>
    %94 = tpu.memref_slice %arg7[%c1_i32_59] : memref<8x!tpu.dma_semaphore, #tpu.memory_space<semaphore_mem>> -> memref<1x!tpu.dma_semaphore, #tpu.memory_space<semaphore_mem>>
    %95 = tpu.memref_squeeze %94 : memref<1x!tpu.dma_semaphore, #tpu.memory_space<semaphore_mem>> -> memref<!tpu.dma_semaphore, #tpu.memory_space<semaphore_mem>>
    tpu.wait_dma2 semaphore(%95 : memref<!tpu.dma_semaphore, #tpu.memory_space<semaphore_mem>>) src(%92 : memref<1x128xf32, #tpu.memory_space<any>>) dst(%93 : memref<1x128xf32, #tpu.memory_space<vmem>>)
    %c2_i32_64 = arith.constant 2 : i32
    %c0_i32_65 = arith.constant 0 : i32
    %c0_i32_66 = arith.constant 0 : i32
    %96 = tpu.memref_slice %arg3[%c0_i32_65, %c0_i32_66] : memref<64x128xf32, #tpu.memory_space<any>> -> memref<1x128xf32, #tpu.memory_space<any>>
    %c2_i32_67 = arith.constant 2 : i32
    %c0_i32_68 = arith.constant 0 : i32
    %97 = tpu.memref_slice %arg6[%c2_i32_67, %c0_i32_68] : memref<8x128xf32, #tpu.memory_space<vmem>> -> memref<1x128xf32, #tpu.memory_space<vmem>>
    %98 = tpu.memref_slice %arg7[%c2_i32_64] : memref<8x!tpu.dma_semaphore, #tpu.memory_space<semaphore_mem>> -> memref<1x!tpu.dma_semaphore, #tpu.memory_space<semaphore_mem>>
    %99 = tpu.memref_squeeze %98 : memref<1x!tpu.dma_semaphore, #tpu.memory_space<semaphore_mem>> -> memref<!tpu.dma_semaphore, #tpu.memory_space<semaphore_mem>>
    tpu.wait_dma2 semaphore(%99 : memref<!tpu.dma_semaphore, #tpu.memory_space<semaphore_mem>>) src(%96 : memref<1x128xf32, #tpu.memory_space<any>>) dst(%97 : memref<1x128xf32, #tpu.memory_space<vmem>>)
    %c3_i32_69 = arith.constant 3 : i32
    %c0_i32_70 = arith.constant 0 : i32
    %c0_i32_71 = arith.constant 0 : i32
    %100 = tpu.memref_slice %arg3[%c0_i32_70, %c0_i32_71] : memref<64x128xf32, #tpu.memory_space<any>> -> memref<1x128xf32, #tpu.memory_space<any>>
    %c3_i32_72 = arith.constant 3 : i32
    %c0_i32_73 = arith.constant 0 : i32
    %101 = tpu.memref_slice %arg6[%c3_i32_72, %c0_i32_73] : memref<8x128xf32, #tpu.memory_space<vmem>> -> memref<1x128xf32, #tpu.memory_space<vmem>>
    %102 = tpu.memref_slice %arg7[%c3_i32_69] : memref<8x!tpu.dma_semaphore, #tpu.memory_space<semaphore_mem>> -> memref<1x!tpu.dma_semaphore, #tpu.memory_space<semaphore_mem>>
    %103 = tpu.memref_squeeze %102 : memref<1x!tpu.dma_semaphore, #tpu.memory_space<semaphore_mem>> -> memref<!tpu.dma_semaphore, #tpu.memory_space<semaphore_mem>>
    tpu.wait_dma2 semaphore(%103 : memref<!tpu.dma_semaphore, #tpu.memory_space<semaphore_mem>>) src(%100 : memref<1x128xf32, #tpu.memory_space<any>>) dst(%101 : memref<1x128xf32, #tpu.memory_space<vmem>>)
    %c4_i32_74 = arith.constant 4 : i32
    %c0_i32_75 = arith.constant 0 : i32
    %c0_i32_76 = arith.constant 0 : i32
    %104 = tpu.memref_slice %arg3[%c0_i32_75, %c0_i32_76] : memref<64x128xf32, #tpu.memory_space<any>> -> memref<1x128xf32, #tpu.memory_space<any>>
    %c4_i32_77 = arith.constant 4 : i32
    %c0_i32_78 = arith.constant 0 : i32
    %105 = tpu.memref_slice %arg6[%c4_i32_77, %c0_i32_78] : memref<8x128xf32, #tpu.memory_space<vmem>> -> memref<1x128xf32, #tpu.memory_space<vmem>>
    %106 = tpu.memref_slice %arg7[%c4_i32_74] : memref<8x!tpu.dma_semaphore, #tpu.memory_space<semaphore_mem>> -> memref<1x!tpu.dma_semaphore, #tpu.memory_space<semaphore_mem>>
    %107 = tpu.memref_squeeze %106 : memref<1x!tpu.dma_semaphore, #tpu.memory_space<semaphore_mem>> -> memref<!tpu.dma_semaphore, #tpu.memory_space<semaphore_mem>>
    tpu.wait_dma2 semaphore(%107 : memref<!tpu.dma_semaphore, #tpu.memory_space<semaphore_mem>>) src(%104 : memref<1x128xf32, #tpu.memory_space<any>>) dst(%105 : memref<1x128xf32, #tpu.memory_space<vmem>>)
    %c5_i32_79 = arith.constant 5 : i32
    %c0_i32_80 = arith.constant 0 : i32
    %c0_i32_81 = arith.constant 0 : i32
    %108 = tpu.memref_slice %arg3[%c0_i32_80, %c0_i32_81] : memref<64x128xf32, #tpu.memory_space<any>> -> memref<1x128xf32, #tpu.memory_space<any>>
    %c5_i32_82 = arith.constant 5 : i32
    %c0_i32_83 = arith.constant 0 : i32
    %109 = tpu.memref_slice %arg6[%c5_i32_82, %c0_i32_83] : memref<8x128xf32, #tpu.memory_space<vmem>> -> memref<1x128xf32, #tpu.memory_space<vmem>>
    %110 = tpu.memref_slice %arg7[%c5_i32_79] : memref<8x!tpu.dma_semaphore, #tpu.memory_space<semaphore_mem>> -> memref<1x!tpu.dma_semaphore, #tpu.memory_space<semaphore_mem>>
    %111 = tpu.memref_squeeze %110 : memref<1x!tpu.dma_semaphore, #tpu.memory_space<semaphore_mem>> -> memref<!tpu.dma_semaphore, #tpu.memory_space<semaphore_mem>>
    tpu.wait_dma2 semaphore(%111 : memref<!tpu.dma_semaphore, #tpu.memory_space<semaphore_mem>>) src(%108 : memref<1x128xf32, #tpu.memory_space<any>>) dst(%109 : memref<1x128xf32, #tpu.memory_space<vmem>>)
    %c6_i32_84 = arith.constant 6 : i32
    %c0_i32_85 = arith.constant 0 : i32
    %c0_i32_86 = arith.constant 0 : i32
    %112 = tpu.memref_slice %arg3[%c0_i32_85, %c0_i32_86] : memref<64x128xf32, #tpu.memory_space<any>> -> memref<1x128xf32, #tpu.memory_space<any>>
    %c6_i32_87 = arith.constant 6 : i32
    %c0_i32_88 = arith.constant 0 : i32
    %113 = tpu.memref_slice %arg6[%c6_i32_87, %c0_i32_88] : memref<8x128xf32, #tpu.memory_space<vmem>> -> memref<1x128xf32, #tpu.memory_space<vmem>>
    %114 = tpu.memref_slice %arg7[%c6_i32_84] : memref<8x!tpu.dma_semaphore, #tpu.memory_space<semaphore_mem>> -> memref<1x!tpu.dma_semaphore, #tpu.memory_space<semaphore_mem>>
    %115 = tpu.memref_squeeze %114 : memref<1x!tpu.dma_semaphore, #tpu.memory_space<semaphore_mem>> -> memref<!tpu.dma_semaphore, #tpu.memory_space<semaphore_mem>>
    tpu.wait_dma2 semaphore(%115 : memref<!tpu.dma_semaphore, #tpu.memory_space<semaphore_mem>>) src(%112 : memref<1x128xf32, #tpu.memory_space<any>>) dst(%113 : memref<1x128xf32, #tpu.memory_space<vmem>>)
    %c7_i32_89 = arith.constant 7 : i32
    %c0_i32_90 = arith.constant 0 : i32
    %c0_i32_91 = arith.constant 0 : i32
    %116 = tpu.memref_slice %arg3[%c0_i32_90, %c0_i32_91] : memref<64x128xf32, #tpu.memory_space<any>> -> memref<1x128xf32, #tpu.memory_space<any>>
    %c7_i32_92 = arith.constant 7 : i32
    %c0_i32_93 = arith.constant 0 : i32
    %117 = tpu.memref_slice %arg6[%c7_i32_92, %c0_i32_93] : memref<8x128xf32, #tpu.memory_space<vmem>> -> memref<1x128xf32, #tpu.memory_space<vmem>>
    %118 = tpu.memref_slice %arg7[%c7_i32_89] : memref<8x!tpu.dma_semaphore, #tpu.memory_space<semaphore_mem>> -> memref<1x!tpu.dma_semaphore, #tpu.memory_space<semaphore_mem>>
    %119 = tpu.memref_squeeze %118 : memref<1x!tpu.dma_semaphore, #tpu.memory_space<semaphore_mem>> -> memref<!tpu.dma_semaphore, #tpu.memory_space<semaphore_mem>>
    tpu.wait_dma2 semaphore(%119 : memref<!tpu.dma_semaphore, #tpu.memory_space<semaphore_mem>>) src(%116 : memref<1x128xf32, #tpu.memory_space<any>>) dst(%117 : memref<1x128xf32, #tpu.memory_space<vmem>>)
    %c0 = arith.constant 0 : index
    %c0_94 = arith.constant 0 : index
    %120 = vector.load %arg6[%c0, %c0_94] : memref<8x128xf32, #tpu.memory_space<vmem>>, vector<8x128xf32>
    %c0_95 = arith.constant 0 : index
    %c0_96 = arith.constant 0 : index
    %121 = vector.load %arg4[%c0_95, %c0_96] : memref<8x128xf32, #tpu.memory_space<vmem>>, vector<8x128xf32>
    %122 = arith.addf %120, %121 : vector<8x128xf32>
    %c0_97 = arith.constant 0 : index
    %c0_98 = arith.constant 0 : index
    %c0_99 = arith.constant 0 : index
    %123 = vector.load %arg5[%c0_97, %c0_98, %c0_99] : memref<1x8x128xf32, #tpu.memory_space<vmem>>, vector<1x8x128xf32>
    %124 = vector.shape_cast %123 : vector<1x8x128xf32> to vector<8x128xf32>
    %125 = vector.shape_cast %122 : vector<8x128xf32> to vector<1x8x128xf32>
    tpu.vector_store %arg5[%c0_97, %c0_98, %c0_99], %125 {strides = array<i32>} : memref<1x8x128xf32, #tpu.memory_space<vmem>>, vector<1x8x128xf32>,
    return
  }
  func.func @transform_1(%arg0: i32, %arg1: i32, %arg2: memref<2x16xi32, #tpu.memory_space<smem>>) -> (i32, i32) {
    %c0_i32 = arith.constant 0 : i32
    %c0_i32_0 = arith.constant 0 : i32
    return %arg1, %c0_i32 : i32, i32
  }
  func.func @transform_2(%arg0: i32, %arg1: i32, %arg2: memref<2x16xi32, #tpu.memory_space<smem>>) -> (i32, i32, i32) {
    %c0_i32 = arith.constant 0 : i32
    %c0_i32_0 = arith.constant 0 : i32
    return %arg0, %arg1, %c0_i32 : i32, i32, i32
  }
}

</mosaic_0001>

<llo_original>
// kernel: tpu_custom_call.1
$region0: #{tpu_custom_call.1}
  #allocation0 [shape = 'u32[]', space=smem, size = 0x4, offset = 0x4, fixed_abs, tag = 'smem constant byte address 0x4 - core index']
  #allocation1 [shape = 'u32[144,128]{1,0:T(1,128)}', space=vmem, size = 0x12000, scoped, tag = 'internal scratch']
  #allocation2 [shape = 'f32[8,128]{1,0:T(8,128)}', space=vmem, size = 0x1000, scoped, tag = 'scratch operand']
  #allocation3 [shape = 's32[8]{0}', space=sflag, size = 0x20, scoped, tag = 'scratch operand']
  #allocation4 [shape = 's32[1]{0}', space=sflag, size = 0x4, scoped, tag = 'scoped memory for tpu_custom_call.1']
  #allocation5 [shape = 'u8[1024]{0}', space=smem, size = 0x400, scoped, tag = 'prefetched SMEM operand 0']
  #allocation10 [shape = 's32[]', space=sflag, size = 0x4, offset = 0, fixed_abs, tag = 'sflag constant byte address 0x0 - dummy sync flag']
  #allocation11 [shape = 's32[]', space=sflag, size = 0x4, offset = 0, fixed_abs, tag = 'sflag constant byte address 0x0 - dummy sync flag']
  #allocation12 [shape = 'u32[]', space=smem, size = 0x4, offset = 0x44, fixed_abs, tag = 'smem constant byte address 0x44 - assertion arg 0']
  #allocation13 [shape = 'u32[]', space=smem, size = 0x4, offset = 0x48, fixed_abs, tag = 'smem constant byte address 0x48 - assertion arg 1']
  #allocation14 [shape = 's32[]', space=sflag, size = 0x4, offset = 0, fixed_abs, tag = 'sflag constant byte address 0x0 - dummy sync flag']
  #allocation15 [shape = 's32[]', space=sflag, size = 0x4, offset = 0, fixed_abs, tag = 'sflag constant byte address 0x0 - dummy sync flag']
  #allocation16 [shape = 's32[]', space=sflag, size = 0x4, offset = 0, fixed_abs, tag = 'sflag constant byte address 0x0 - dummy sync flag']
  #allocation17 [shape = 's32[]', space=sflag, size = 0x4, offset = 0, fixed_abs, tag = 'sflag constant byte address 0x0 - dummy sync flag']
  #allocation18 [shape = 's32[]', space=sflag, size = 0x4, offset = 0, fixed_abs, tag = 'sflag constant byte address 0x0 - dummy sync flag']
  #allocation19 [shape = 's32[]', space=sflag, size = 0x4, offset = 0, fixed_abs, tag = 'sflag constant byte address 0x0 - dummy sync flag']
  #allocation20 [shape = 's32[]', space=sflag, size = 0x4, offset = 0, fixed_abs, tag = 'sflag constant byte address 0x0 - dummy sync flag']
  #allocation21 [shape = 's32[]', space=sflag, size = 0x4, offset = 0, fixed_abs, tag = 'sflag constant byte address 0x0 - dummy sync flag']
  #allocation22 [shape = 's32[]', space=sflag, size = 0x4, offset = 0, fixed_abs, tag = 'sflag constant byte address 0x0 - dummy sync flag']
  #allocation23 [shape = 's32[]', space=sflag, size = 0x4, offset = 0, fixed_abs, tag = 'sflag constant byte address 0x0 - dummy sync flag']
  #allocation24 [shape = 's32[]', space=sflag, size = 0x4, offset = 0, fixed_abs, tag = 'sflag constant byte address 0x0 - dummy sync flag']
  #allocation25 [shape = 's32[]', space=sflag, size = 0x4, offset = 0, fixed_abs, tag = 'sflag constant byte address 0x0 - dummy sync flag']
  #allocation26 [shape = 's32[]', space=sflag, size = 0x4, offset = 0, fixed_abs, tag = 'sflag constant byte address 0x0 - dummy sync flag']
  #allocation27 [shape = 's32[]', space=sflag, size = 0x4, offset = 0, fixed_abs, tag = 'sflag constant byte address 0x0 - dummy sync flag']
  %s0 = inlined_call_operand.hbm [shape: s32[2,16], index: 0, kind: input, shape index: {}]
  %s1 = inlined_call_operand.hbm [shape: f32[64,128], index: 1, kind: input, shape index: {}]
  %s2 = inlined_call_operand.hbm [shape: f32[16,128], index: 2, kind: input, shape index: {}]
  %s3 = inlined_call_operand.hbm [shape: f32[2,16,128], index: 3, kind: output, shape index: {}]
  %s4 = sld [smem:[#allocation0]]
  $region73: #{tpu_custom_call.1} parent=0
    _
  %s6 = ssub.s32 1, %s4
  %s7 = scalar_select 0, %s6, %s4
  %9 = dma.hbm_to_smem %s0, 32, [#allocation5], [#allocation4]
  %10 = dma.done [#allocation4], 32
  %11 = sfence
  $region1: #{tpu_custom_call.1} parent=0
    #allocation6 [shape = 'u8[8192]{0}', space=vmem, size = 0x2000, scoped, tag = 'input window, operand 2']
    #allocation7 [shape = 's32[2]{0}', space=sflag, size = 0x8, scoped, tag = 'scoped memory for tpu_custom_call.1']
    #allocation8 [shape = 's32[2]{0}', space=sflag, size = 0x8, scoped, tag = 'scoped memory for tpu_custom_call.1']
    #allocation9 [shape = 'u8[8192]{0}', space=vmem, size = 0x2000, scoped, tag = 'output window, operand 0']
    %12 = vsyncpa [#allocation7], 0
    %s13 = scalar_lea.sflag [#allocation7], 1
    %14 = vsyncpa %s13, 0
    %15 = vsyncpa [#allocation8], 0
    %s16 = scalar_lea.sflag [#allocation8], 1
    %17 = vsyncpa %s16, 0
    loop: start=0, step=1, limit=6
    $region2: #{tpu_custom_call.1} parent=1 // loop_pre_header
      _
    $region3: #{tpu_custom_call.1} parent=1 // loop_header
      %s19 = sphi 0, %s23
      %p20 = scmp.ge.s32.totalorder %s19, 6
      %s26 = sphi 0, %s38
      %s27 = sphi 0, %s34
      %s28 = sphi 0, %s26
      %s29 = sphi 0, %s27
      %s30 = sphi 0, %s28
      %s31 = sphi 0, %s29
      %s41 = sphi 0, %s43
      %s44 = sphi 0, %s41
      %s45 = sphi 0, %s44
      %s61 = sphi 0, %s45
      %s69 = sphi 0, %s71
      %s72 = sphi 0, %s69
      %s73 = sphi 0, %s72
      %s89 = sphi 0, %s73
    $region4: #{tpu_custom_call.1} parent=1 // loop_header_branch
      %22 = sbr.rel (%p20) target = $region8
    $region5: #{tpu_custom_call.1} parent=1 // loop_body
      %s24 = ssub.s32 %s19, 1
      %s25 = ssub.s32 %s19, 2
      %s32 = sadd.s32 1, %s27
      %p33 = scmp.ge.s32.totalorder %s32, 2
      %s34 = scalar_select %p33, 0, %s32
      %s35 = sadd.s32 1, %s26
      %s36 = scalar_select %p33, %s35, %s26
      %p37 = scmp.ge.s32.totalorder %s36, 2
      %s38 = scalar_select %p37, 0, %s36
      %s39 = ssub.s32 %s27, %s34
      %p40 = scmp.eq.s32.totalorder %s39, 0
      %s42 = sadd.s32 %s41, 1
      %s43 = scalar_select %p40, %s41, %s42
      %p46 = pneg %p40
      %p47 = scmp.eq.s32.totalorder %s19, 3
      %p48 = por %p46, %p47
      %p49 = scmp.ne.s32.totalorder %s41, %s44
      %p50 = scmp.eq.s32.totalorder %s19, 0
      %p51 = por %p49, %p50
      %p52 = scmp.ne.s32.totalorder %s41, %s44
      %p53 = scmp.eq.s32.totalorder %s24, 3
      %p54 = por %p52, %p53
      %p55 = scmp.ne.s32.totalorder %s44, %s45
      %p56 = scmp.eq.s32.totalorder %s24, 0
      %p57 = por %p55, %p56
      %p58 = scmp.ne.s32.totalorder %s44, %s45
      %p59 = scmp.eq.s32.totalorder %s25, 3
      %p60 = por %p58, %p59
      %p62 = scmp.ne.s32.totalorder %s45, %s61
      %p63 = scmp.eq.s32.totalorder %s25, 0
      %p64 = por %p62, %p63
      %s65 = ssub.s32 %s26, %s38
      %s66 = ssub.s32 %s27, %s34
      %s67 = sor.u32 %s65, %s66
      %p68 = scmp.eq.s32.totalorder %s67, 0
      %s70 = sadd.s32 %s69, 1
      %s71 = scalar_select %p68, %s69, %s70
      %p74 = pneg %p68
      %p75 = scmp.eq.s32.totalorder %s19, 3
      %p76 = por %p74, %p75
      %p77 = scmp.ne.s32.totalorder %s69, %s72
      %p78 = scmp.eq.s32.totalorder %s19, 0
      %p79 = por %p77, %p78
      %p80 = scmp.ne.s32.totalorder %s69, %s72
      %p81 = scmp.eq.s32.totalorder %s24, 3
      %p82 = por %p80, %p81
      %p83 = scmp.ne.s32.totalorder %s72, %s73
      %p84 = scmp.eq.s32.totalorder %s24, 0
      %p85 = por %p83, %p84
      %p86 = scmp.ne.s32.totalorder %s72, %s73
      %p87 = scmp.eq.s32.totalorder %s25, 3
      %p88 = por %p86, %p87
      %p90 = scmp.ne.s32.totalorder %s73, %s89
      %p91 = scmp.eq.s32.totalorder %s25, 0
      %p92 = por %p90, %p91
      %p93 = scmp.le.s32.totalorder 1, %s19
      %p94 = scmp.lt.s32.totalorder %s19, 5
      %p95 = pnand %p93, %p94
      %p96 = pneg %p95
      // Predicated region
      $region9: #{tpu_custom_call.1} parent=5 // pred_check
        _
      $region10: #{tpu_custom_call.1} parent=5 // pred_check_branch
        %98 = sbr.rel (%p95) target = $region12
      $region11: #{tpu_custom_call.1} parent=5 // pred_region
        %s99 = ssub.s32 %s19, 1
      $region12: #{tpu_custom_call.1} parent=5 // pred_fallthru
        _
      %p100 = scmp.lt.s32.totalorder %s19, 4
      // Predicated region
      $region13: #{tpu_custom_call.1} parent=5 // pred_check
        %p101 = pneg %p100
      $region14: #{tpu_custom_call.1} parent=5 // pred_check_branch
        %103 = sbr.rel (%p101) target = $region16
      $region15: #{tpu_custom_call.1} parent=5 // pred_region
        // Predicated region
        $region17: #{tpu_custom_call.1} parent=15 // pred_check
          %p104 = pneg %p51
        $region18: #{tpu_custom_call.1} parent=15 // pred_check_branch
          %106 = sbr.rel (%p104) target = $region20
        $region19: #{tpu_custom_call.1} parent=15 // pred_region
          %s107 = sand.u32 %s41, 1
          %s108 = scalar_lea.sflag [#allocation7], %s107
          %s109 = sand.u32 %s41, 1
          %s110 = smul.addr %s109, 8
          %s111 = scalar_lea.vmem [#allocation6], %s110
          %s113 = ssub.s32 128, 128
          %114 = vsyncadd %s108, %s113
          %s115 = smul.addr %s27, 128
          %s116 = scalar_lea.hbm %s2, %s115
          %s118 = sshll.u32 %s111, 4
          %s119 = int_to_ptr.vmem [resolvable:$true] %s118
          %121 = dma.hbm_to_vmem [thread:$0]  %s116, 128, %s119, %s108
        $region20: #{tpu_custom_call.1} parent=15 // pred_fallthru
          _
      $region16: #{tpu_custom_call.1} parent=5 // pred_fallthru
        _
      %p122 = scmp.le.s32.totalorder 1, %s19
      %p123 = scmp.lt.s32.totalorder %s19, 5
      %p124 = pnand %p122, %p123
      %p125 = pneg %p124
      // Predicated region
      $region21: #{tpu_custom_call.1} parent=5 // pred_check
        _
      $region22: #{tpu_custom_call.1} parent=5 // pred_check_branch
        %127 = sbr.rel (%p124) target = $region24
      $region23: #{tpu_custom_call.1} parent=5 // pred_region
        %s128 = ssub.s32 %s19, 1
        %s129 = sand.u32 %s44, 1
        %s130 = scalar_lea.sflag [#allocation7], %s129
        %s131 = sand.u32 %s44, 1
        %s132 = smul.addr %s131, 8
        %s133 = scalar_lea.vmem [#allocation6], %s132
        // Predicated region
        $region25: #{tpu_custom_call.1} parent=23 // pred_check
          %p134 = pneg %p57
        $region26: #{tpu_custom_call.1} parent=23 // pred_check_branch
          %136 = sbr.rel (%p134) target = $region28
        $region27: #{tpu_custom_call.1} parent=23 // pred_region
          %137 = dma.done %s130, 128
        $region28: #{tpu_custom_call.1} parent=23 // pred_fallthru
          _
        %s138 = sand.u32 %s44, 1
        %s139 = scalar_lea.sflag [#allocation7], %s138
        %s140 = sand.u32 %s44, 1
        %s141 = smul.addr %s140, 8
        %s142 = scalar_lea.vmem [#allocation6], %s141
        %p143 = pneg %p57
        %p144 = pneg %p54
        %p145 = pneg %p85
        %p146 = pneg %p82
        %s147 = sand.u32 %s72, 1
        %s148 = scalar_lea.sflag [#allocation8], %s147
        %s149 = sand.u32 %s72, 1
        %s150 = smul.addr %s149, 8
        %s151 = scalar_lea.vmem [#allocation9], %s150
        %s152 = smul.u32 %s29, 8
        %s153 = sshra.s32 %s152, 7
        %s154 = sand.u32 %s152, 127
        %s155 = sadd.s32 %s153, %s28
        %s156 = smul.u32 %s155, 128
        %s157 = sshra.s32 %s152, 7
        %s158 = sand.u32 %s152, 127
        %s159 = sadd.s32 %s156, %s158
        %s160 = sld [smem:[#allocation5 + %s159]]
        %p161 = scmp.gt.s32.totalorder %s160, 0
        %s162 = scalar_select %p161, %s160, 0
        %p163 = scmp.lt.s32.totalorder %s162, 63
        %s164 = scalar_select %p163, %s162, 63
        %s165 = smul.addr %s164, 16
        %s166 = scalar_lea.hbm %s1, %s165
        // Predicated region
        $region29: #{tpu_custom_call.1} parent=23 // pred_check
          _
        $region30: #{tpu_custom_call.1} parent=23 // pred_check_branch
          %168 = sbr.rel target = $region32
        $region31: #{tpu_custom_call.1} parent=23 // pred_region
          %169 = sst [smem:[#allocation12]] [#allocation11]
          %170 = sst [smem:[#allocation13]] [#allocation10]
        $region32: #{tpu_custom_call.1} parent=23 // pred_fallthru
          _
        %172 = shalt.err (0)
        %s174 = sshll.u32 [#allocation2], 4
        %s175 = int_to_ptr.vmem [resolvable:$true] %s174
        %177 = dma.hbm_to_vmem [thread:$0]  %s166, 16, %s175, [#allocation3]
        %s178 = sadd.s32 %s152, 1
        %s179 = sshra.s32 %s178, 7
        %s180 = sand.u32 %s178, 127
        %s181 = sadd.s32 %s179, %s28
        %s182 = smul.u32 %s181, 128
        %s183 = sshra.s32 %s178, 7
        %s184 = sand.u32 %s178, 127
        %s185 = sadd.s32 %s182, %s184
        %s186 = sld [smem:[#allocation5 + %s185]]
        %p187 = scmp.gt.s32.totalorder %s186, 0
        %s188 = scalar_select %p187, %s186, 0
        %p189 = scmp.lt.s32.totalorder %s188, 63
        %s190 = scalar_select %p189, %s188, 63
        %s191 = smul.addr %s190, 16
        %s192 = scalar_lea.hbm %s1, %s191
        %s193 = scalar_lea.vmem [#allocation2], 1
        %s194 = scalar_lea.sflag [#allocation3], 1
        // Predicated region
        $region33: #{tpu_custom_call.1} parent=23 // pred_check
          _
        $region34: #{tpu_custom_call.1} parent=23 // pred_check_branch
          %196 = sbr.rel target = $region36
        $region35: #{tpu_custom_call.1} parent=23 // pred_region
          %197 = sst [smem:[#allocation12]] [#allocation15]
          %198 = sst [smem:[#allocation13]] [#allocation14]
        $region36: #{tpu_custom_call.1} parent=23 // pred_fallthru
          _
        %200 = shalt.err (0)
        %s202 = sshll.u32 %s193, 4
        %s203 = int_to_ptr.vmem [resolvable:$true] %s202
        %205 = dma.hbm_to_vmem [thread:$0]  %s192, 16, %s203, %s194
        %s206 = sadd.s32 %s152, 2
        %s207 = sshra.s32 %s206, 7
        %s208 = sand.u32 %s206, 127
        %s209 = sadd.s32 %s207, %s28
        %s210 = smul.u32 %s209, 128
        %s211 = sshra.s32 %s206, 7
        %s212 = sand.u32 %s206, 127
        %s213 = sadd.s32 %s210, %s212
        %s214 = sld [smem:[#allocation5 + %s213]]
        %p215 = scmp.gt.s32.totalorder %s214, 0
        %s216 = scalar_select %p215, %s214, 0
        %p217 = scmp.lt.s32.totalorder %s216, 63
        %s218 = scalar_select %p217, %s216, 63
        %s219 = smul.addr %s218, 16
        %s220 = scalar_lea.hbm %s1, %s219
        %s221 = scalar_lea.vmem [#allocation2], 2
        %s222 = scalar_lea.sflag [#allocation3], 2
        // Predicated region
        $region37: #{tpu_custom_call.1} parent=23 // pred_check
          _
        $region38: #{tpu_custom_call.1} parent=23 // pred_check_branch
          %224 = sbr.rel target = $region40
        $region39: #{tpu_custom_call.1} parent=23 // pred_region
          %225 = sst [smem:[#allocation12]] [#allocation17]
          %226 = sst [smem:[#allocation13]] [#allocation16]
        $region40: #{tpu_custom_call.1} parent=23 // pred_fallthru
          _
        %228 = shalt.err (0)
        %s230 = sshll.u32 %s221, 4
        %s231 = int_to_ptr.vmem [resolvable:$true] %s230
        %233 = dma.hbm_to_vmem [thread:$0]  %s220, 16, %s231, %s222
        %s234 = sadd.s32 %s152, 3
        %s235 = sshra.s32 %s234, 7
        %s236 = sand.u32 %s234, 127
        %s237 = sadd.s32 %s235, %s28
        %s238 = smul.u32 %s237, 128
        %s239 = sshra.s32 %s234, 7
        %s240 = sand.u32 %s234, 127
        %s241 = sadd.s32 %s238, %s240
        %s242 = sld [smem:[#allocation5 + %s241]]
        %p243 = scmp.gt.s32.totalorder %s242, 0
        %s244 = scalar_select %p243, %s242, 0
        %p245 = scmp.lt.s32.totalorder %s244, 63
        %s246 = scalar_select %p245, %s244, 63
        %s247 = smul.addr %s246, 16
        %s248 = scalar_lea.hbm %s1, %s247
        %s249 = scalar_lea.vmem [#allocation2], 3
        %s250 = scalar_lea.sflag [#allocation3], 3
        // Predicated region
        $region41: #{tpu_custom_call.1} parent=23 // pred_check
          _
        $region42: #{tpu_custom_call.1} parent=23 // pred_check_branch
          %252 = sbr.rel target = $region44
        $region43: #{tpu_custom_call.1} parent=23 // pred_region
          %253 = sst [smem:[#allocation12]] [#allocation19]
          %254 = sst [smem:[#allocation13]] [#allocation18]
        $region44: #{tpu_custom_call.1} parent=23 // pred_fallthru
          _
        %256 = shalt.err (0)
        %s258 = sshll.u32 %s249, 4
        %s259 = int_to_ptr.vmem [resolvable:$true] %s258
        %261 = dma.hbm_to_vmem [thread:$0]  %s248, 16, %s259, %s250
        %s262 = sadd.s32 %s152, 4
        %s263 = sshra.s32 %s262, 7
        %s264 = sand.u32 %s262, 127
        %s265 = sadd.s32 %s263, %s28
        %s266 = smul.u32 %s265, 128
        %s267 = sshra.s32 %s262, 7
        %s268 = sand.u32 %s262, 127
        %s269 = sadd.s32 %s266, %s268
        %s270 = sld [smem:[#allocation5 + %s269]]
        %p271 = scmp.gt.s32.totalorder %s270, 0
        %s272 = scalar_select %p271, %s270, 0
        %p273 = scmp.lt.s32.totalorder %s272, 63
        %s274 = scalar_select %p273, %s272, 63
        %s275 = smul.addr %s274, 16
        %s276 = scalar_lea.hbm %s1, %s275
        %s277 = scalar_lea.vmem [#allocation2], 4
        %s278 = scalar_lea.sflag [#allocation3], 4
        // Predicated region
        $region45: #{tpu_custom_call.1} parent=23 // pred_check
          _
        $region46: #{tpu_custom_call.1} parent=23 // pred_check_branch
          %280 = sbr.rel target = $region48
        $region47: #{tpu_custom_call.1} parent=23 // pred_region
          %281 = sst [smem:[#allocation12]] [#allocation21]
          %282 = sst [smem:[#allocation13]] [#allocation20]
        $region48: #{tpu_custom_call.1} parent=23 // pred_fallthru
          _
        %284 = shalt.err (0)
        %s286 = sshll.u32 %s277, 4
        %s287 = int_to_ptr.vmem [resolvable:$true] %s286
        %289 = dma.hbm_to_vmem [thread:$0]  %s276, 16, %s287, %s278
        %s290 = sadd.s32 %s152, 5
        %s291 = sshra.s32 %s290, 7
        %s292 = sand.u32 %s290, 127
        %s293 = sadd.s32 %s291, %s28
        %s294 = smul.u32 %s293, 128
        %s295 = sshra.s32 %s290, 7
        %s296 = sand.u32 %s290, 127
        %s297 = sadd.s32 %s294, %s296
        %s298 = sld [smem:[#allocation5 + %s297]]
        %p299 = scmp.gt.s32.totalorder %s298, 0
        %s300 = scalar_select %p299, %s298, 0
        %p301 = scmp.lt.s32.totalorder %s300, 63
        %s302 = scalar_select %p301, %s300, 63
        %s303 = smul.addr %s302, 16
        %s304 = scalar_lea.hbm %s1, %s303
        %s305 = scalar_lea.vmem [#allocation2], 5
        %s306 = scalar_lea.sflag [#allocation3], 5
        // Predicated region
        $region49: #{tpu_custom_call.1} parent=23 // pred_check
          _
        $region50: #{tpu_custom_call.1} parent=23 // pred_check_branch
          %308 = sbr.rel target = $region52
        $region51: #{tpu_custom_call.1} parent=23 // pred_region
          %309 = sst [smem:[#allocation12]] [#allocation23]
          %310 = sst [smem:[#allocation13]] [#allocation22]
        $region52: #{tpu_custom_call.1} parent=23 // pred_fallthru
          _
        %312 = shalt.err (0)
        %s314 = sshll.u32 %s305, 4
        %s315 = int_to_ptr.vmem [resolvable:$true] %s314
        %317 = dma.hbm_to_vmem [thread:$0]  %s304, 16, %s315, %s306
        %s318 = sadd.s32 %s152, 6
        %s319 = sshra.s32 %s318, 7
        %s320 = sand.u32 %s318, 127
        %s321 = sadd.s32 %s319, %s28
        %s322 = smul.u32 %s321, 128
        %s323 = sshra.s32 %s318, 7
        %s324 = sand.u32 %s318, 127
        %s325 = sadd.s32 %s322, %s324
        %s326 = sld [smem:[#allocation5 + %s325]]
        %p327 = scmp.gt.s32.totalorder %s326, 0
        %s328 = scalar_select %p327, %s326, 0
        %p329 = scmp.lt.s32.totalorder %s328, 63
        %s330 = scalar_select %p329, %s328, 63
        %s331 = smul.addr %s330, 16
        %s332 = scalar_lea.hbm %s1, %s331
        %s333 = scalar_lea.vmem [#allocation2], 6
        %s334 = scalar_lea.sflag [#allocation3], 6
        // Predicated region
        $region53: #{tpu_custom_call.1} parent=23 // pred_check
          _
        $region54: #{tpu_custom_call.1} parent=23 // pred_check_branch
          %336 = sbr.rel target = $region56
        $region55: #{tpu_custom_call.1} parent=23 // pred_region
          %337 = sst [smem:[#allocation12]] [#allocation25]
          %338 = sst [smem:[#allocation13]] [#allocation24]
        $region56: #{tpu_custom_call.1} parent=23 // pred_fallthru
          _
        %340 = shalt.err (0)
        %s342 = sshll.u32 %s333, 4
        %s343 = int_to_ptr.vmem [resolvable:$true] %s342
        %345 = dma.hbm_to_vmem [thread:$0]  %s332, 16, %s343, %s334
        %s346 = sadd.s32 %s152, 7
        %s347 = sshra.s32 %s346, 7
        %s348 = sand.u32 %s346, 127
        %s349 = sadd.s32 %s347, %s28
        %s350 = smul.u32 %s349, 128
        %s351 = sshra.s32 %s346, 7
        %s352 = sand.u32 %s346, 127
        %s353 = sadd.s32 %s350, %s352
        %s354 = sld [smem:[#allocation5 + %s353]]
        %p355 = scmp.gt.s32.totalorder %s354, 0
        %s356 = scalar_select %p355, %s354, 0
        %p357 = scmp.lt.s32.totalorder %s356, 63
        %s358 = scalar_select %p357, %s356, 63
        %s359 = smul.addr %s358, 16
        %s360 = scalar_lea.hbm %s1, %s359
        %s361 = scalar_lea.vmem [#allocation2], 7
        %s362 = scalar_lea.sflag [#allocation3], 7
        // Predicated region
        $region57: #{tpu_custom_call.1} parent=23 // pred_check
          _
        $region58: #{tpu_custom_call.1} parent=23 // pred_check_branch
          %364 = sbr.rel target = $region60
        $region59: #{tpu_custom_call.1} parent=23 // pred_region
          %365 = sst [smem:[#allocation12]] [#allocation27]
          %366 = sst [smem:[#allocation13]] [#allocation26]
        $region60: #{tpu_custom_call.1} parent=23 // pred_fallthru
          _
        %368 = shalt.err (0)
        %s370 = sshll.u32 %s361, 4
        %s371 = int_to_ptr.vmem [resolvable:$true] %s370
        %373 = dma.hbm_to_vmem [thread:$0]  %s360, 16, %s371, %s362
        %s374 = smul.u32 1, 1
        %s375 = sshll.u32 %s374, 4
        %376 = dma.done [#allocation3], %s375
        %s377 = sshll.u32 %s374, 4
        %378 = dma.done %s194, %s377
        %s379 = sshll.u32 %s374, 4
        %380 = dma.done %s222, %s379
        %s381 = sshll.u32 %s374, 4
        %382 = dma.done %s250, %s381
        %s383 = sshll.u32 %s374, 4
        %384 = dma.done %s278, %s383
        %s385 = sshll.u32 %s374, 4
        %386 = dma.done %s306, %s385
        %s387 = sshll.u32 %s374, 4
        %388 = dma.done %s334, %s387
        %s389 = sshll.u32 %s374, 4
        %390 = dma.done %s362, %s389
        %v391 = vld [vmem:[#allocation2] sm:$0xff]
        %v392 = vld [vmem:[%s133] sm:$0xff]
        %v393 = vadd.f32 %v391, %v392
        %394 = vst [vmem:[%s151] sm:$0xff] %v393
        %s395 = sand.u32 %s72, 1
        %s396 = scalar_lea.sflag [#allocation8], %s395
        %s397 = sand.u32 %s72, 1
        %s398 = smul.addr %s397, 8
        %s399 = scalar_lea.vmem [#allocation9], %s398
        // Predicated region
        $region61: #{tpu_custom_call.1} parent=23 // pred_check
          %p400 = pneg %p82
        $region62: #{tpu_custom_call.1} parent=23 // pred_check_branch
          %402 = sbr.rel (%p400) target = $region64
        $region63: #{tpu_custom_call.1} parent=23 // pred_region
          %s404 = ssub.s32 128, 128
          %405 = vsyncadd %s396, %s404
          %s406 = smul.addr %s28, 2
          %s407 = sadd.s32 %s29, %s406
          %s408 = smul.addr %s407, 128
          %s409 = scalar_lea.hbm %s3, %s408
          %s411 = sshll.u32 %s399, 4
          %s412 = int_to_ptr.vmem [resolvable:$true] %s411
          %414 = dma.vmem_to_hbm [thread:$0]  %s412, 128, %s409, %s396
        $region64: #{tpu_custom_call.1} parent=23 // pred_fallthru
          _
      $region24: #{tpu_custom_call.1} parent=5 // pred_fallthru
        _
      %p415 = scmp.le.s32.totalorder 2, %s19
      // Predicated region
      $region65: #{tpu_custom_call.1} parent=5 // pred_check
        %p416 = pneg %p415
      $region66: #{tpu_custom_call.1} parent=5 // pred_check_branch
        %418 = sbr.rel (%p416) target = $region68
      $region67: #{tpu_custom_call.1} parent=5 // pred_region
        %s419 = ssub.s32 %s19, 2
        // Predicated region
        $region69: #{tpu_custom_call.1} parent=67 // pred_check
          %p420 = pneg %p88
        $region70: #{tpu_custom_call.1} parent=67 // pred_check_branch
          %422 = sbr.rel (%p420) target = $region72
        $region71: #{tpu_custom_call.1} parent=67 // pred_region
          %s423 = sand.u32 %s73, 1
          %s424 = scalar_lea.sflag [#allocation8], %s423
          %s425 = sand.u32 %s73, 1
          %s426 = smul.addr %s425, 8
          %s427 = scalar_lea.vmem [#allocation9], %s426
          %428 = dma.done %s424, 128
        $region72: #{tpu_custom_call.1} parent=67 // pred_fallthru
          _
      $region68: #{tpu_custom_call.1} parent=5 // pred_fallthru
        _
    $region6: #{tpu_custom_call.1} parent=1 // loop_footer
      %s23 = sadd.s32 1, %s19
    $region7: #{tpu_custom_call.1} parent=1 // loop_footer_branch
      %18 = sbr.rel target = $region3
    $region8: #{tpu_custom_call.1} parent=1 // loop_exit
      _
    %429 = vsyncpa [#allocation7], 1
    %s430 = scalar_lea.sflag [#allocation7], 1
    %431 = vsyncpa %s430, 1
    %432 = vsyncpa [#allocation8], 1
    %s433 = scalar_lea.sflag [#allocation8], 1
    %434 = vsyncpa %s433, 1
  %435 = vsyncmov [#allocation3]
  %s436 = vpop.sfrf %435
  %p437 = scmp.eq.s32.totalorder %s436, 0
  %p438 = pneg %p437
  %440 = shalt.err (%p438)
  %s441 = scalar_lea.sflag [#allocation3], 1
  %442 = vsyncmov %s441
  %s443 = vpop.sfrf %442
  %p444 = scmp.eq.s32.totalorder %s443, 0
  %p445 = pneg %p444
  %447 = shalt.err (%p445)
  %s448 = scalar_lea.sflag [#allocation3], 2
  %449 = vsyncmov %s448
  %s450 = vpop.sfrf %449
  %p451 = scmp.eq.s32.totalorder %s450, 0
  %p452 = pneg %p451
  %454 = shalt.err (%p452)
  %s455 = scalar_lea.sflag [#allocation3], 3
  %456 = vsyncmov %s455
  %s457 = vpop.sfrf %456
  %p458 = scmp.eq.s32.totalorder %s457, 0
  %p459 = pneg %p458
  %461 = shalt.err (%p459)
  %s462 = scalar_lea.sflag [#allocation3], 4
  %463 = vsyncmov %s462
  %s464 = vpop.sfrf %463
  %p465 = scmp.eq.s32.totalorder %s464, 0
  %p466 = pneg %p465
  %468 = shalt.err (%p466)
  %s469 = scalar_lea.sflag [#allocation3], 5
  %470 = vsyncmov %s469
  %s471 = vpop.sfrf %470
  %p472 = scmp.eq.s32.totalorder %s471, 0
  %p473 = pneg %p472
  %475 = shalt.err (%p473)
  %s476 = scalar_lea.sflag [#allocation3], 6
  %477 = vsyncmov %s476
  %s478 = vpop.sfrf %477
  %p479 = scmp.eq.s32.totalorder %s478, 0
  %p480 = pneg %p479
  %482 = shalt.err (%p480)
  %s483 = scalar_lea.sflag [#allocation3], 7
  %484 = vsyncmov %s483
  %s485 = vpop.sfrf %484
  %p486 = scmp.eq.s32.totalorder %s485, 0
  %p487 = pneg %p486
  %489 = shalt.err (%p487)

</llo_original>
